<compile_context>
chip_gen: v7x
topology: tpu7x:2x2x1
jax: 0.10.0
libtpu: 0.0.40
codegen_flags: <defaults>
</compile_context>

<pallas_src>
import jax
import jax.numpy as jnp
from jax.experimental import pallas as pl
from jax.experimental.pallas import tpu as pltpu

_LANES = 128
_SUBLANES = 8


def _round_up(x, m):
    return (x + m - 1) // m * m


def _cdiv(a, b):
    return -(-a // b)


def _choose_pack(num_types, emb_dim):
    # How many embeddings fit in one 128-lane row.
    if emb_dim < _LANES and _LANES % emb_dim == 0:
        pack = _LANES // emb_dim
    else:
        pack = 1
    # Guard: packed table is pack^2 x the original and the one-hot K axis is
    # pack*num_types -- fall back to pack=1 for large type dictionaries.
    if pack > 1:
        kdim = pack * num_types
        table_bytes = kdim * pack * emb_dim * 4
        if kdim > 2048 or table_bytes > (4 << 20):
            pack = 1
    return pack


def _build_packed_table(emb_table, pack):
    """(num_types, emb_dim) -> (pack*num_types, pack*emb_dim), interleaved rows.

    Row (id*pack + slot) holds emb_table[id] in columns
    [slot*emb_dim, (slot+1)*emb_dim) and zeros elsewhere, so a simple
    `keys == lane_iota` comparison builds the packed one-hot.
    """
    if pack == 1:
        return emb_table
    num_types, emb_dim = emb_table.shape
    eye = jnp.eye(pack, dtype=emb_table.dtype)
    big = emb_table[:, None, None, :] * eye[None, :, :, None]   # (T, P, P, E)
    return big.reshape(num_types * pack, pack * emb_dim)


def _embed_kernel(keys_ref, table_ref, out_ref):
    # keys_ref:  (tile_r, pack)  int32, keys[n, p] = id(n, p) * pack + p
    # table_ref: (kdim, out_w)   resident packed (interleaved) table
    # out_ref:   (tile_r, out_w) pack embeddings per lane-dense 128-lane row
    keys = keys_ref[...]
    tile_r, pack = keys.shape
    kdim = table_ref.shape[0]

    col = jax.lax.broadcasted_iota(jnp.int32, (tile_r, kdim), 1)
    hot = keys[:, 0:1] == col
    for p in range(1, pack):          # pack is a tiny static constant (<= 4)
        hot = jnp.logical_or(hot, keys[:, p:p + 1] == col)
    onehot = hot.astype(table_ref.dtype)   # single cast at the end

    # (tile_r, pack*num_types) @ (pack*num_types, pack*emb_dim) on the MXU.
    out_ref[...] = jnp.dot(
        onehot, table_ref[...], preferred_element_type=jnp.float32
    ).astype(out_ref.dtype)


def _choose_tile_r(rows, bytes_per_row, *, cap_rows=8192, budget_bytes=20 << 20):
    cap = max(_SUBLANES, (budget_bytes // bytes_per_row) // _SUBLANES * _SUBLANES)
    cap = min(cap, cap_rows)
    if rows <= cap:
        if rows >= 2048:
            # Split into >=2 grid steps so both v7x TensorCores get work.
            return _round_up(_cdiv(rows, 2), _SUBLANES)
        return _round_up(rows, _SUBLANES)
    steps = max(2, _cdiv(rows, cap))
    return _round_up(_cdiv(rows, steps), _SUBLANES)


def make_type_dict_node_encoder(emb_table, *, tile_n=None):
    """Returns encode(node_types) -> emb_table[node_types[:, 0]]  of shape (N, emb_dim).

    The packed (interleaved) table is built ONCE here (hoisted out of the
    per-call path), mirroring module __init__ in the PyTorch spec.
    """
    emb_table = jnp.asarray(emb_table)
    num_types, emb_dim = emb_table.shape
    pack = _choose_pack(num_types, emb_dim)
    kdim = pack * num_types
    out_w = pack * emb_dim
    big_table = _build_packed_table(emb_table, pack)
    slot_off = jnp.arange(pack, dtype=jnp.int32)[None, :] if pack > 1 else None

    out_w_pad = _round_up(out_w, _LANES)
    kdim_pad = _round_up(kdim, _LANES)
    # Per-row VMEM: 2x double-buffered output block + 2x (lane-padded) keys
    # block + the one-hot temporary feeding the MXU.
    bytes_per_row = 4 * (2 * out_w_pad + 2 * _LANES + kdim_pad)
    table_bytes = 2 * kdim * out_w_pad * 4

    def encode(node_types):
        ids = node_types
        if ids.ndim > 1:
            ids = ids[:, 0]                 # TypeDictNodeEncoder uses batch.x[:, 0]
        ids = ids.astype(jnp.int32)
        n = ids.shape[0]

        n_pad = _round_up(n, pack)          # minimal padding only (<= pack-1 nodes)
        if n_pad != n:
            ids = jnp.pad(ids, (0, n_pad - n))   # pad with id 0 (valid); trimmed below
        rows = n_pad // pack
        keys = ids.reshape(rows, pack)
        if pack > 1:
            keys = keys * pack + slot_off   # interleaved packed-table row ids

        if tile_n is not None:
            tile_r = _round_up(max(1, _cdiv(int(tile_n), pack)), _SUBLANES)
            tile_r = min(tile_r, _round_up(rows, _SUBLANES))
        else:
            tile_r = _choose_tile_r(rows, bytes_per_row)
        grid = (_cdiv(rows, tile_r),)       # ragged last block -> masked by Pallas

        vmem_limit = min(int(bytes_per_row * tile_r + table_bytes) + (16 << 20),
                         48 << 20)

        out_packed = pl.pallas_call(
            _embed_kernel,
            out_shape=jax.ShapeDtypeStruct((rows, out_w), emb_table.dtype),
            grid_spec=pltpu.PrefetchScalarGridSpec(
                num_scalar_prefetch=0,
                grid=grid,
                in_specs=[
                    pl.BlockSpec((tile_r, pack), lambda i: (i, 0)),   # packed keys
                    pl.BlockSpec((kdim, out_w), lambda i: (0, 0)),    # resident table
                ],
                out_specs=pl.BlockSpec((tile_r, out_w), lambda i: (i, 0)),
            ),
            compiler_params=pltpu.CompilerParams(
                dimension_semantics=("parallel",),
                vmem_limit_bytes=vmem_limit,
            ),
        )(keys, big_table)

        # Free row-major view back to (n_pad, emb_dim); trim only if N % pack != 0.
        out = out_packed.reshape(n_pad, emb_dim)
        if n_pad != n:
            out = out[:n]
        return out

    return encode


def type_dict_node_encode(node_types, emb_table, *, tile_n=None):
    """One-shot convenience wrapper (rebuilds the packed table each call).

    Prefer make_type_dict_node_encoder(...) so the table prep is hoisted.
    """
    return make_type_dict_node_encoder(emb_table, tile_n=tile_n)(node_types)


if __name__ == "__main__":
    # Small, deterministic setup consistent with the module:
    #   num_types = cfg.dataset.node_encoder_num_types -> 8
    #   emb_dim   = 32
    #   batch.x   : (N, F) integer node features, only column 0 is used.
    num_types = 8
    emb_dim = 32
    n_nodes = 16
    n_feat = 4

    key = jax.random.PRNGKey(0)
    k_table, k_idx, k_idx2 = jax.random.split(key, 3)

    # torch.nn.Embedding default init: weight ~ N(0, 1)
    emb_table = jax.random.normal(k_table, (num_types, emb_dim), dtype=jnp.float32)
    x = jax.random.randint(k_idx, (n_nodes, n_feat), 0, num_types, dtype=jnp.int32)

    encode = jax.jit(make_type_dict_node_encoder(emb_table))
    out = jax.block_until_ready(encode(x))

    ref = emb_table[x[:, 0]]
    assert out.shape == (n_nodes, emb_dim)
    assert jnp.allclose(out, ref, atol=1e-5), "mismatch vs. reference embedding lookup"

    # Second check: odd N (exercises pack padding, multi-step grid, ragged last block).
    n2 = 530
    ids2 = jax.random.randint(k_idx2, (n2,), 0, num_types, dtype=jnp.int32)
    encode_small = jax.jit(make_type_dict_node_encoder(emb_table, tile_n=256))
    out2 = jax.block_until_ready(encode_small(ids2))
    ref2 = emb_table[ids2]
    assert out2.shape == (n2, emb_dim)
    assert jnp.allclose(out2, ref2, atol=1e-5), "mismatch on padded/multi-tile case"

    print("KERNEL_OK")
</pallas_src>

<mosaic_0001>
module attributes {stable_mosaic.version = 11 : i64} {
  func.func @_embed_kernel(%arg0: i32, %arg1: memref<8x4xi32, #tpu.memory_space<vmem>>, %arg2: memref<32x128xf32, #tpu.memory_space<vmem>>, %arg3: memref<8x128xf32, #tpu.memory_space<vmem>>) attributes {dimension_semantics = [#tpu.dimension_semantics<parallel>], iteration_bounds = array<i64: 1>, scalar_prefetch = 0 : i64, scratch_operands = 0 : i64, tpu.core_type = #tpu.core_type<tc>, window_params = [{transform_indices = @transform_0, window_bounds = array<i64: 8, 4>}, {pipeline_mode = #tpu.pipeline_mode<synchronous>, transform_indices = @transform_1, window_bounds = array<i64: 32, 128>}, {transform_indices = @transform_2, window_bounds = array<i64: 8, 128>}]} {
    %c0 = arith.constant 0 : index
    %c0_0 = arith.constant 0 : index
    %0 = vector.load %arg1[%c0, %c0_0] : memref<8x4xi32, #tpu.memory_space<vmem>>, vector<8x4xi32>
    %1 = tpu.iota {dimensions = array<i32: 1>} : vector<8x32xi32>
    %2 = vector.extract_strided_slice %0 {offsets = [0, 0], sizes = [8, 1], strides = [1, 1]} : vector<8x4xi32> to vector<8x1xi32>
    %3 = vector.broadcast %2 : vector<8x1xi32> to vector<8x32xi32>
    %4 = arith.cmpi eq, %3, %1 : vector<8x32xi32>
    %5 = vector.extract_strided_slice %0 {offsets = [0, 1], sizes = [8, 1], strides = [1, 1]} : vector<8x4xi32> to vector<8x1xi32>
    %6 = vector.broadcast %5 : vector<8x1xi32> to vector<8x32xi32>
    %7 = arith.cmpi eq, %6, %1 : vector<8x32xi32>
    %8 = arith.ori %4, %7 : vector<8x32xi1>
    %9 = vector.extract_strided_slice %0 {offsets = [0, 2], sizes = [8, 1], strides = [1, 1]} : vector<8x4xi32> to vector<8x1xi32>
    %10 = vector.broadcast %9 : vector<8x1xi32> to vector<8x32xi32>
    %11 = arith.cmpi eq, %10, %1 : vector<8x32xi32>
    %12 = arith.ori %8, %11 : vector<8x32xi1>
    %13 = vector.extract_strided_slice %0 {offsets = [0, 3], sizes = [8, 1], strides = [1, 1]} : vector<8x4xi32> to vector<8x1xi32>
    %14 = vector.broadcast %13 : vector<8x1xi32> to vector<8x32xi32>
    %15 = arith.cmpi eq, %14, %1 : vector<8x32xi32>
    %16 = arith.ori %12, %15 : vector<8x32xi1>
    %17 = arith.extui %16 : vector<8x32xi1> to vector<8x32xi32>
    %18 = arith.sitofp %17 : vector<8x32xi32> to vector<8x32xf32>
    %c0_1 = arith.constant 0 : index
    %c0_2 = arith.constant 0 : index
    %19 = vector.load %arg2[%c0_1, %c0_2] : memref<32x128xf32, #tpu.memory_space<vmem>>, vector<32x128xf32>
    %cst = arith.constant dense<0.000000e+00> : vector<8x128xf32>
    %20 = tpu.matmul %18, %19, %cst {dimension_numbers = #tpu.dot_dimension_numbers<[1], [0], [0], [1], [0, 0, 1, 1], [], []>} : vector<8x32xf32>, vector<32x128xf32>, vector<8x128xf32> -> vector<8x128xf32>
    %c0_3 = arith.constant 0 : index
    %c0_4 = arith.constant 0 : index
    %21 = vector.load %arg3[%c0_3, %c0_4] : memref<8x128xf32, #tpu.memory_space<vmem>>, vector<8x128xf32>
    tpu.vector_store %arg3[%c0_3, %c0_4], %20 {strides = array<i32>} : memref<8x128xf32, #tpu.memory_space<vmem>>, vector<8x128xf32>,
    return
  }
  func.func @transform_0(%arg0: i32) -> (i32, i32) {
    %c0_i32 = arith.constant 0 : i32
    %c0_i32_0 = arith.constant 0 : i32
    return %arg0, %c0_i32 : i32, i32
  }
  func.func @transform_1(%arg0: i32) -> (i32, i32) {
    %c0_i32 = arith.constant 0 : i32
    %c0_i32_0 = arith.constant 0 : i32
    %c0_i32_1 = arith.constant 0 : i32
    return %c0_i32, %c0_i32_0 : i32, i32
  }
  func.func @transform_2(%arg0: i32) -> (i32, i32) {
    %c0_i32 = arith.constant 0 : i32
    %c0_i32_0 = arith.constant 0 : i32
    return %arg0, %c0_i32 : i32, i32
  }
}

</mosaic_0001>

<llo_original>
// kernel: encode.1
$region0: #{encode.1}
  #allocation0 [shape = 'u32[]', space=smem, size = 0x4, offset = 0x4, fixed_abs, tag = 'smem constant byte address 0x4 - core index']
  #allocation1 [shape = 'u32[144,128]{1,0:T(1,128)}', space=vmem, size = 0x12000, scoped, tag = 'internal scratch']
  %s0 = inlined_call_operand.vmem [shape: s32[4,4], index: 0, kind: input, shape index: {}]
  %s1 = inlined_call_operand.hbm [shape: f32[32,128], index: 1, kind: input, shape index: {}]
  %s2 = inlined_call_operand.vmem [shape: f32[4,128], index: 2, kind: output, shape index: {}]
  %s3 = sld [smem:[#allocation0]]
  $region52: #{encode.1} parent=0
    _
  %s5 = ssub.s32 1, %s3
  %s6 = scalar_select 0, %s5, %s3
  $region1: #{encode.1} parent=0
    #allocation2 [shape = 'u8[16384]{0}', space=vmem, size = 0x4000, scoped, tag = 'input window, operand 1, single buffered']
    #allocation3 [shape = 's32[1]{0}', space=sflag, size = 0x4, scoped, tag = 'scoped memory for encode.1']
    #allocation4 [shape = 'u8[4096]{0}', space=vmem, size = 0x1000, scoped, tag = 'output window, operand 0, single buffered']
    %7 = vsyncpa [#allocation3], 0
    // Predicated region
    $region2: #{encode.1} parent=1 // pred_check
      _
    $region3: #{encode.1} parent=1 // pred_check_branch
      %9 = sbr.rel (0) target = $region5
    $region4: #{encode.1} parent=1 // pred_region
      _
    $region5: #{encode.1} parent=1 // pred_fallthru
      _
    // Predicated region
    $region6: #{encode.1} parent=1 // pred_check
      _
    $region7: #{encode.1} parent=1 // pred_check_branch
      %11 = sbr.rel (0) target = $region9
    $region8: #{encode.1} parent=1 // pred_region
      %s13 = ssub.s32 512, 512
      %14 = vsyncadd [#allocation3], %s13
      %s15 = sshll.u32 [#allocation2], 4
      %s16 = int_to_ptr.vmem [resolvable:$true] %s15
      %21 = dma.hbm_to_vmem [thread:$0]  %s1, 512, %s16, [#allocation3], 128, 128, 8
    $region9: #{encode.1} parent=1 // pred_fallthru
      _
    // Predicated region
    $region10: #{encode.1} parent=1 // pred_check
      _
    $region11: #{encode.1} parent=1 // pred_check_branch
      %23 = sbr.rel (0) target = $region13
    $region12: #{encode.1} parent=1 // pred_region
      %24 = dma.done [#allocation3], 512
    $region13: #{encode.1} parent=1 // pred_fallthru
      _
    %v25 = vld [vmem:[%s0] sm:$0xff]
    %v26 = vlaneseq
    %v27 = vand.u32 %v26, 127
    %28 = vset.pattern.permute.xlu0 0
    %29 = vperm.xlu0 %28, %v25
    %v30 = vpop.permute.xlu0 %29
    %vm31 = vcmp.eq.s32.totalorder %v30, %v27
    %32 = vset.pattern.permute.xlu0 1
    %33 = vperm.xlu0 %32, %v25
    %v34 = vpop.permute.xlu0 %33
    %vm35 = vcmp.eq.s32.totalorder %v34, %v27
    %vm36 = vmor %vm31, %vm35
    %37 = vset.pattern.permute.xlu0 2
    %38 = vperm.xlu0 %37, %v25
    %v39 = vpop.permute.xlu0 %38
    %vm40 = vcmp.eq.s32.totalorder %v39, %v27
    %vm41 = vmor %vm36, %vm40
    %42 = vset.pattern.permute.xlu0 3
    %43 = vperm.xlu0 %42, %v25
    %v44 = vpop.permute.xlu0 %43
    %vm45 = vcmp.eq.s32.totalorder %v44, %v27
    %vm46 = vmor %vm41, %vm45
    %v47 = vsel %vm46, 1, 0
    %v48 = vcvt.s32.f32 %v47
    %v49 = vld [vmem:[#allocation2] sm:$0xff]
    %v50 = vld [vmem:[#allocation2 + $0x8] sm:$0xff]
    %v51 = vld [vmem:[#allocation2 + $0x10] sm:$0xff]
    %v52 = vld [vmem:[#allocation2 + $0x18] sm:$0xff]
    %vm53 = vcmask 261120
    %v55 = vsel %vm53, %v48, 0
    %57 = vmatprep.subr.mxu0 0.0
    %58 = vmatpush1.msra.mxu0 %v49
    %59 = vmatprep.subr.mxu0 0.0
    %60 = vmatpush1.msra.mxu0 %v50
    %61 = vmatprep.subr.mxu0 0.0
    %62 = vmatpush1.msra.mxu0 %v51
    %63 = vmatprep.subr.mxu0 0.0
    %64 = vmatpush1.msra.mxu0 %v52
    %65 = vmatprep.subr.mxu0 0.0
    %66 = vmatpush1.msra.mxu0 0.0
    %67 = vmatprep.subr.mxu0 0.0
    %68 = vmatpush1.msra.mxu0 0.0
    %69 = vmatprep.subr.mxu0 0.0
    %70 = vmatpush1.msra.mxu0 0.0
    %71 = vmatprep.subr.mxu0 0.0
    %72 = vmatpush1.msra.mxu0 0.0
    %73 = vmatprep.subr.mxu0 0.0
    %74 = vmatpush1.msra.mxu0 0.0
    %75 = vmatprep.subr.mxu0 0.0
    %76 = vmatpush1.msra.mxu0 0.0
    %77 = vmatprep.subr.mxu0 0.0
    %78 = vmatpush1.msra.mxu0 0.0
    %79 = vmatprep.subr.mxu0 0.0
    %80 = vmatpush1.msra.mxu0 0.0
    %81 = vmatprep.subr.mxu0 0.0
    %82 = vmatpush1.msra.mxu0 0.0
    %83 = vmatprep.subr.mxu0 0.0
    %84 = vmatpush1.msra.mxu0 0.0
    %85 = vmatprep.subr.mxu0 0.0
    %86 = vmatpush1.msra.mxu0 0.0
    %87 = vmatprep.subr.mxu0 0.0
    %88 = vmatpush1.msra.mxu0 0.0
    %89 = vmatprep.subr.mxu0 0.0
    %90 = vmatpush1.msra.mxu0 0.0
    %91 = vmatprep.subr.mxu0 0.0
    %92 = vmatpush1.msra.mxu0 0.0
    %93 = vmatprep.subr.mxu0 0.0
    %94 = vmatpush1.msra.mxu0 0.0
    %95 = vmatprep.subr.mxu0 0.0
    %96 = vmatpush1.msra.mxu0 0.0
    %97 = vmatprep.subr.mxu0 0.0
    %98 = vmatpush1.msra.mxu0 0.0
    %99 = vmatprep.subr.mxu0 0.0
    %100 = vmatpush1.msra.mxu0 0.0
    %101 = vmatprep.subr.mxu0 0.0
    %102 = vmatpush1.msra.mxu0 0.0
    %103 = vmatprep.subr.mxu0 0.0
    %104 = vmatpush1.msra.mxu0 0.0
    %105 = vmatprep.subr.mxu0 0.0
    %106 = vmatpush1.msra.mxu0 0.0
    %107 = vmatprep.subr.mxu0 0.0
    %108 = vmatpush1.msra.mxu0 0.0
    %109 = vmatprep.subr.mxu0 0.0
    %110 = vmatpush1.msra.mxu0 0.0
    %111 = vmatprep.subr.mxu0 0.0
    %112 = vmatpush1.msra.mxu0 0.0
    %113 = vmatprep.subr.mxu0 0.0
    %114 = vmatpush1.msra.mxu0 0.0
    %115 = vmatprep.subr.mxu0 0.0
    %116 = vmatpush1.msra.mxu0 0.0
    %117 = vmatprep.subr.mxu0 0.0
    %118 = vmatpush1.msra.mxu0 0.0
    %119 = vmatprep.subr.mxu0 0.0
    %120 = vmatpush1.msra.mxu0 0.0
    %121 = vmatprep.mubr.f32.mxu0 0.0
    %122 = vmatmul.mubr.f32.gmra.mrb[0].mxu0 %v55
    %v123 = vpop.f32.mrb[0].mxu0
    %v124 = vadd.f32 0.0, %v123
    %v125 = vpop.f32.mrb[0].mxu0
    %126 = vdwg.mxu0
    %127 = vst [vmem:[#allocation4] sm:$0xff] %v124
    // Predicated region
    $region14: #{encode.1} parent=1 // pred_check
      _
    $region15: #{encode.1} parent=1 // pred_check_branch
      %129 = sbr.rel (0) target = $region17
    $region16: #{encode.1} parent=1 // pred_region
      // Predicated region
      $region18: #{encode.1} parent=16 // pred_check
        _
      $region19: #{encode.1} parent=16 // pred_check_branch
        %131 = sbr.rel (0) target = $region21
      $region20: #{encode.1} parent=16 // pred_region
        // Predicated region
        $region22: #{encode.1} parent=20 // pred_check
          _
        $region23: #{encode.1} parent=20 // pred_check_branch
          %133 = sbr.rel target = $region25
        $region24: #{encode.1} parent=20 // pred_region
          // Predicated region
          $region37: #{encode.1} parent=24 // pred_check
            _
          $region38: #{encode.1} parent=24 // pred_check_branch
            %148 = sbr.rel (0) target = $region40
          $region39: #{encode.1} parent=24 // pred_region
            loop: start=0, step=1, limit=1
            $region41: #{encode.1} parent=39 // loop_pre_header
              _
            $region42: #{encode.1} parent=39 // loop_header
              %s151 = sphi 0, %s155
              %p152 = scmp.ge.s32.totalorder %s151, 1
              %s156 = sphi [#allocation4], [#allocation4]
              %s157 = sphi %s2, %s2
            $region43: #{encode.1} parent=39 // loop_header_branch
              %154 = sbr.rel (%p152) target = $region47
            $region44: #{encode.1} parent=39 // loop_body
              %v158 = vld [vmem:[%s156] sm:$0xf]
              %159 = vst [vmem:[%s157] sm:$0xf] %v158
            $region45: #{encode.1} parent=39 // loop_footer
              %s155 = sadd.s32 1, %s151
            $region46: #{encode.1} parent=39 // loop_footer_branch
              %150 = sbr.rel target = $region42
            $region47: #{encode.1} parent=39 // loop_exit
              _
          $region40: #{encode.1} parent=24 // pred_fallthru
            _
        $region25: #{encode.1} parent=20 // pred_fallthru
          _
        // Predicated region
        $region26: #{encode.1} parent=20 // pred_check
          _
        $region27: #{encode.1} parent=20 // pred_check_branch
          %135 = sbr.rel (0) target = $region29
        $region28: #{encode.1} parent=20 // pred_region
          loop: start=0, step=1, limit=1
          $region30: #{encode.1} parent=28 // loop_pre_header
            _
          $region31: #{encode.1} parent=28 // loop_header
            %s138 = sphi 0, %s142
            %p139 = scmp.ge.s32.totalorder %s138, 1
            %s143 = sphi [#allocation4], [#allocation4]
            %s144 = sphi %s2, %s2
          $region32: #{encode.1} parent=28 // loop_header_branch
            %141 = sbr.rel (%p139) target = $region36
          $region33: #{encode.1} parent=28 // loop_body
            %v145 = vld [vmem:[%s143] sm:$0xf]
            %146 = vst [vmem:[%s144] sm:$0xf] %v145
          $region34: #{encode.1} parent=28 // loop_footer
            %s142 = sadd.s32 1, %s138
          $region35: #{encode.1} parent=28 // loop_footer_branch
            %137 = sbr.rel target = $region31
          $region36: #{encode.1} parent=28 // loop_exit
            _
        $region29: #{encode.1} parent=20 // pred_fallthru
          _
      $region21: #{encode.1} parent=16 // pred_fallthru
        _
      %160 = vnop
    $region17: #{encode.1} parent=1 // pred_fallthru
      _
    // Predicated region
    $region48: #{encode.1} parent=1 // pred_check
      _
    $region49: #{encode.1} parent=1 // pred_check_branch
      %162 = sbr.rel (0) target = $region51
    $region50: #{encode.1} parent=1 // pred_region
      _
    $region51: #{encode.1} parent=1 // pred_fallthru
      _
    %163 = vsyncpa [#allocation3], 1

</llo_original>
